<compile_context>
chip_gen: v7x
topology: tpu7x:2x2x1
jax: 0.10.0
libtpu: 0.0.40
codegen_flags: <defaults>
</compile_context>

<pallas_src>
import math
import functools

import jax
import jax.numpy as jnp
from jax.experimental import pallas as pl
from jax.experimental.pallas import tpu as pltpu


def _gelu_exact(x):
    # PyTorch nn.GELU() default is the exact erf-based GELU.
    return 0.5 * x * (1.0 + jax.lax.erf(x * (1.0 / math.sqrt(2.0))))


def _round_up(x, m):
    return ((x + m - 1) // m) * m


def proj_head_kernel(x_ref, w1_ref, b1_ref, w2_ref, b2_ref, w3_ref, b3_ref, o_ref):
    # x block: (1, Cin, tm) -> (Cin, tm); tokens on the lane axis.
    x = x_ref[0].astype(w1_ref.dtype)

    # layer 1: (Ch, Cin) @ (Cin, tm) -> (Ch, tm), f32 accumulation
    h = jnp.dot(w1_ref[...], x, preferred_element_type=jnp.float32)
    h = _gelu_exact(h + b1_ref[...])            # bias (Ch, 1) broadcasts over lanes

    # layer 2: (Ch, Ch) @ (Ch, tm) -> (Ch, tm)
    h = jnp.dot(w2_ref[...], h.astype(w2_ref.dtype), preferred_element_type=jnp.float32)
    h = _gelu_exact(h + b2_ref[...])

    # layer 3: (Cb, Ch) @ (Ch, tm) -> (Cb, tm)
    o = jnp.dot(w3_ref[...], h.astype(w3_ref.dtype), preferred_element_type=jnp.float32)
    o = o + b3_ref[...]

    o_ref[0] = o.astype(o_ref.dtype)


@functools.partial(jax.jit, static_argnames=("tm", "compute_dtype"))
def proj_head_forward(x_nchw, w1, b1, w2, b2, w3, b3, *, tm=512,
                      compute_dtype=jnp.bfloat16):
    """x_nchw: [N, C_in, H, W] -> [N, C_out, H, W].

    Weights are stored in PyTorch conv orientation: w* is (C_out, C_in)."""
    N, Cin, H, W = x_nchw.shape
    Ch = w1.shape[0]
    Cb = w3.shape[0]
    HW = H * W

    # NCHW -> (N, Cin, H*W) is a free reshape (no transpose, no HBM round trip).
    x_tok = x_nchw.reshape(N, Cin, HW)

    # Lane-pad the token axis to a multiple of 128 and of the tile.
    tm_eff = min(tm, _round_up(HW, 128))
    HW_pad = _round_up(HW, tm_eff)
    if HW_pad != HW:
        x_tok = jnp.pad(x_tok, ((0, 0), (0, 0), (0, HW_pad - HW)))

    # bf16 weights: ~2x MXU throughput, half the resident weight VMEM.
    w1c = w1.astype(compute_dtype)
    w2c = w2.astype(compute_dtype)
    w3c = w3.astype(compute_dtype)
    # Biases stay f32 (bias/GELU math in f32; matters on v5e with no bf16 VPU/EUP).
    b1c = b1.reshape(Ch, 1).astype(jnp.float32)
    b2c = b2.reshape(Ch, 1).astype(jnp.float32)
    b3c = b3.reshape(Cb, 1).astype(jnp.float32)

    grid = (N, HW_pad // tm_eff)
    const = lambda n, j: (0, 0)         # weights / biases: resident, fetched once
    tok = lambda n, j: (n, 0, j)        # activations: batch x token-tile

    flops = 2 * N * HW_pad * (Cin * Ch + Ch * Ch + Ch * Cb)
    transcendentals = 2 * N * HW_pad * Ch
    bytes_accessed = (
        x_tok.size * x_tok.dtype.itemsize
        + (w1c.size + w2c.size + w3c.size) * jnp.dtype(compute_dtype).itemsize
        + (b1c.size + b2c.size + b3c.size) * 4
        + N * Cb * HW_pad * jnp.dtype(x_nchw.dtype).itemsize
    )

    out_tok = pl.pallas_call(
        proj_head_kernel,
        out_shape=jax.ShapeDtypeStruct((N, Cb, HW_pad), x_nchw.dtype),
        grid=grid,
        in_specs=[
            pl.BlockSpec((1, Cin, tm_eff), tok),
            pl.BlockSpec((Ch, Cin), const),
            pl.BlockSpec((Ch, 1), const),
            pl.BlockSpec((Ch, Ch), const),
            pl.BlockSpec((Ch, 1), const),
            pl.BlockSpec((Cb, Ch), const),
            pl.BlockSpec((Cb, 1), const),
        ],
        out_specs=pl.BlockSpec((1, Cb, tm_eff), tok),
        compiler_params=pltpu.CompilerParams(
            dimension_semantics=("parallel", "parallel"),
            vmem_limit_bytes=64 * 1024 * 1024,
        ),
        cost_estimate=pl.CostEstimate(
            flops=flops,
            transcendentals=transcendentals,
            bytes_accessed=bytes_accessed,
        ),
    )(x_tok, w1c, b1c, w2c, b2c, w3c, b3c)

    # (N, Cb, HW_pad) -> slice off lane padding -> NCHW (free reshape).
    return out_tok[:, :, :HW].reshape(N, Cb, H, W)


def init_proj_head_params(key, in_dim, hidden_dim, bottleneck_dim):
    """Matches ProjHead._init_weights: trunc_normal_(std=0.02) truncates at
    +/-2 *absolute* (~100 sigma for std=0.02), i.e. effectively normal*0.02;
    biases init to 0.  Weights stored as (C_out, C_in) like the 1x1 conv."""
    k1, k2, k3 = jax.random.split(key, 3)
    std = 0.02
    w1 = (jax.random.normal(k1, (hidden_dim, in_dim)) * std).astype(jnp.float32)
    w2 = (jax.random.normal(k2, (hidden_dim, hidden_dim)) * std).astype(jnp.float32)
    w3 = (jax.random.normal(k3, (bottleneck_dim, hidden_dim)) * std).astype(jnp.float32)
    b1 = jnp.zeros((hidden_dim,), jnp.float32)
    b2 = jnp.zeros((hidden_dim,), jnp.float32)
    b3 = jnp.zeros((bottleneck_dim,), jnp.float32)
    return w1, b1, w2, b2, w3, b3


def proj_head_reference(x_nchw, w1, b1, w2, b2, w3, b3):
    """Plain-JAX f32 reference of the same per-pixel MLP (for verification)."""
    N, Cin, H, W = x_nchw.shape
    x = x_nchw.reshape(N, Cin, H * W)
    h = _gelu_exact(jnp.einsum("oc,ncs->nos", w1, x) + b1[None, :, None])
    h = _gelu_exact(jnp.einsum("oc,ncs->nos", w2, h) + b2[None, :, None])
    o = jnp.einsum("oc,ncs->nos", w3, h) + b3[None, :, None]
    return o.reshape(N, -1, H, W)


if __name__ == "__main__":
    # Small shapes consistent with the module (scaled-down hidden/bottleneck dims).
    N, Cin, H, W = 2, 16, 16, 16
    hidden_dim, bottleneck_dim = 64, 32

    key = jax.random.PRNGKey(0)
    kx, kp = jax.random.split(key)
    x = jax.random.normal(kx, (N, Cin, H, W), dtype=jnp.float32)
    params = init_proj_head_params(kp, Cin, hidden_dim, bottleneck_dim)

    out = proj_head_forward(x, *params)
    out = jax.block_until_ready(out)

    ref = proj_head_reference(x, *params)
    assert out.shape == (N, bottleneck_dim, H, W)
    # bf16 MXU inputs with f32 accumulation -> loosened tolerance vs f32 reference.
    max_err = float(jnp.max(jnp.abs(out - ref)))
    assert jnp.allclose(out, ref, rtol=2e-2, atol=1e-4), max_err

    print("KERNEL_OK")
</pallas_src>

<mosaic_0001>
module attributes {stable_mosaic.version = 11 : i64} {
  func.func @proj_head_kernel(%arg0: i32, %arg1: i32, %arg2: memref<1x16x256xf32, #tpu.memory_space<vmem>>, %arg3: memref<64x16xbf16, #tpu.memory_space<vmem>>, %arg4: memref<64x1xf32, #tpu.memory_space<vmem>>, %arg5: memref<64x64xbf16, #tpu.memory_space<vmem>>, %arg6: memref<64x1xf32, #tpu.memory_space<vmem>>, %arg7: memref<32x64xbf16, #tpu.memory_space<vmem>>, %arg8: memref<32x1xf32, #tpu.memory_space<vmem>>, %arg9: memref<1x32x256xf32, #tpu.memory_space<vmem>>) attributes {dimension_semantics = [#tpu.dimension_semantics<parallel>, #tpu.dimension_semantics<parallel>], iteration_bounds = array<i64: 2, 1>, scalar_prefetch = 0 : i64, scratch_operands = 0 : i64, tpu.core_type = #tpu.core_type<tc>, window_params = [{transform_indices = @transform_0, window_bounds = array<i64: 1, 16, 256>}, {pipeline_mode = #tpu.pipeline_mode<synchronous>, transform_indices = @transform_1, window_bounds = array<i64: 64, 16>}, {pipeline_mode = #tpu.pipeline_mode<synchronous>, transform_indices = @transform_2, window_bounds = array<i64: 64, 1>}, {pipeline_mode = #tpu.pipeline_mode<synchronous>, transform_indices = @transform_3, window_bounds = array<i64: 64, 64>}, {pipeline_mode = #tpu.pipeline_mode<synchronous>, transform_indices = @transform_4, window_bounds = array<i64: 64, 1>}, {pipeline_mode = #tpu.pipeline_mode<synchronous>, transform_indices = @transform_5, window_bounds = array<i64: 32, 64>}, {pipeline_mode = #tpu.pipeline_mode<synchronous>, transform_indices = @transform_6, window_bounds = array<i64: 32, 1>}, {transform_indices = @transform_7, window_bounds = array<i64: 1, 32, 256>}]} {
    %c0 = arith.constant 0 : index
    %c0_0 = arith.constant 0 : index
    %c0_1 = arith.constant 0 : index
    %0 = vector.load %arg2[%c0, %c0_0, %c0_1] : memref<1x16x256xf32, #tpu.memory_space<vmem>>, vector<1x16x256xf32>
    %1 = vector.shape_cast %0 : vector<1x16x256xf32> to vector<16x256xf32>
    %2 = arith.truncf %1 : vector<16x256xf32> to vector<16x256xbf16>
    %c0_2 = arith.constant 0 : index
    %c0_3 = arith.constant 0 : index
    %3 = vector.load %arg3[%c0_2, %c0_3] : memref<64x16xbf16, #tpu.memory_space<vmem>>, vector<64x16xbf16>
    %cst = arith.constant dense<0.000000e+00> : vector<64x256xf32>
    %4 = tpu.matmul %3, %2, %cst {dimension_numbers = #tpu.dot_dimension_numbers<[1], [0], [0], [1], [0, 0, 1, 1], [], []>} : vector<64x16xbf16>, vector<16x256xbf16>, vector<64x256xf32> -> vector<64x256xf32>
    %c0_4 = arith.constant 0 : index
    %c0_5 = arith.constant 0 : index
    %5 = vector.load %arg4[%c0_4, %c0_5] : memref<64x1xf32, #tpu.memory_space<vmem>>, vector<64x1xf32>
    %6 = vector.broadcast %5 : vector<64x1xf32> to vector<64x256xf32>
    %7 = arith.addf %4, %6 : vector<64x256xf32>
    %cst_6 = arith.constant 5.000000e-01 : f32
    %8 = vector.broadcast %cst_6 : f32 to vector<64x256xf32>
    %9 = arith.mulf %8, %7 : vector<64x256xf32>
    %cst_7 = arith.constant 0.707106769 : f32
    %10 = vector.broadcast %cst_7 : f32 to vector<64x256xf32>
    %11 = arith.mulf %7, %10 : vector<64x256xf32>
    %12 = math.erf %11 : vector<64x256xf32>
    %cst_8 = arith.constant 1.000000e+00 : f32
    %13 = vector.broadcast %cst_8 : f32 to vector<64x256xf32>
    %14 = arith.addf %13, %12 : vector<64x256xf32>
    %15 = arith.mulf %9, %14 : vector<64x256xf32>
    %c0_9 = arith.constant 0 : index
    %c0_10 = arith.constant 0 : index
    %16 = vector.load %arg5[%c0_9, %c0_10] : memref<64x64xbf16, #tpu.memory_space<vmem>>, vector<64x64xbf16>
    %17 = arith.truncf %15 : vector<64x256xf32> to vector<64x256xbf16>
    %cst_11 = arith.constant dense<0.000000e+00> : vector<64x256xf32>
    %18 = tpu.matmul %16, %17, %cst_11 {dimension_numbers = #tpu.dot_dimension_numbers<[1], [0], [0], [1], [0, 0, 1, 1], [], []>} : vector<64x64xbf16>, vector<64x256xbf16>, vector<64x256xf32> -> vector<64x256xf32>
    %c0_12 = arith.constant 0 : index
    %c0_13 = arith.constant 0 : index
    %19 = vector.load %arg6[%c0_12, %c0_13] : memref<64x1xf32, #tpu.memory_space<vmem>>, vector<64x1xf32>
    %20 = vector.broadcast %19 : vector<64x1xf32> to vector<64x256xf32>
    %21 = arith.addf %18, %20 : vector<64x256xf32>
    %cst_14 = arith.constant 5.000000e-01 : f32
    %22 = vector.broadcast %cst_14 : f32 to vector<64x256xf32>
    %23 = arith.mulf %22, %21 : vector<64x256xf32>
    %cst_15 = arith.constant 0.707106769 : f32
    %24 = vector.broadcast %cst_15 : f32 to vector<64x256xf32>
    %25 = arith.mulf %21, %24 : vector<64x256xf32>
    %26 = math.erf %25 : vector<64x256xf32>
    %cst_16 = arith.constant 1.000000e+00 : f32
    %27 = vector.broadcast %cst_16 : f32 to vector<64x256xf32>
    %28 = arith.addf %27, %26 : vector<64x256xf32>
    %29 = arith.mulf %23, %28 : vector<64x256xf32>
    %c0_17 = arith.constant 0 : index
    %c0_18 = arith.constant 0 : index
    %30 = vector.load %arg7[%c0_17, %c0_18] : memref<32x64xbf16, #tpu.memory_space<vmem>>, vector<32x64xbf16>
    %31 = arith.truncf %29 : vector<64x256xf32> to vector<64x256xbf16>
    %cst_19 = arith.constant dense<0.000000e+00> : vector<32x256xf32>
    %32 = tpu.matmul %30, %31, %cst_19 {dimension_numbers = #tpu.dot_dimension_numbers<[1], [0], [0], [1], [0, 0, 1, 1], [], []>} : vector<32x64xbf16>, vector<64x256xbf16>, vector<32x256xf32> -> vector<32x256xf32>
    %c0_20 = arith.constant 0 : index
    %c0_21 = arith.constant 0 : index
    %33 = vector.load %arg8[%c0_20, %c0_21] : memref<32x1xf32, #tpu.memory_space<vmem>>, vector<32x1xf32>
    %34 = vector.broadcast %33 : vector<32x1xf32> to vector<32x256xf32>
    %35 = arith.addf %32, %34 : vector<32x256xf32>
    %c0_22 = arith.constant 0 : index
    %c0_23 = arith.constant 0 : index
    %c0_24 = arith.constant 0 : index
    %36 = vector.load %arg9[%c0_22, %c0_23, %c0_24] : memref<1x32x256xf32, #tpu.memory_space<vmem>>, vector<1x32x256xf32>
    %37 = vector.shape_cast %36 : vector<1x32x256xf32> to vector<32x256xf32>
    %38 = vector.shape_cast %35 : vector<32x256xf32> to vector<1x32x256xf32>
    tpu.vector_store %arg9[%c0_22, %c0_23, %c0_24], %38 {strides = array<i32>} : memref<1x32x256xf32, #tpu.memory_space<vmem>>, vector<1x32x256xf32>,
    return
  }
  func.func @transform_0(%arg0: i32, %arg1: i32) -> (i32, i32, i32) {
    %c0_i32 = arith.constant 0 : i32
    %c0_i32_0 = arith.constant 0 : i32
    return %arg0, %c0_i32, %arg1 : i32, i32, i32
  }
  func.func @transform_1(%arg0: i32, %arg1: i32) -> (i32, i32) {
    %c0_i32 = arith.constant 0 : i32
    %c0_i32_0 = arith.constant 0 : i32
    %c0_i32_1 = arith.constant 0 : i32
    return %c0_i32, %c0_i32_0 : i32, i32
  }
  func.func @transform_2(%arg0: i32, %arg1: i32) -> (i32, i32) {
    %c0_i32 = arith.constant 0 : i32
    %c0_i32_0 = arith.constant 0 : i32
    %c0_i32_1 = arith.constant 0 : i32
    return %c0_i32, %c0_i32_0 : i32, i32
  }
  func.func @transform_3(%arg0: i32, %arg1: i32) -> (i32, i32) {
    %c0_i32 = arith.constant 0 : i32
    %c0_i32_0 = arith.constant 0 : i32
    %c0_i32_1 = arith.constant 0 : i32
    return %c0_i32, %c0_i32_0 : i32, i32
  }
  func.func @transform_4(%arg0: i32, %arg1: i32) -> (i32, i32) {
    %c0_i32 = arith.constant 0 : i32
    %c0_i32_0 = arith.constant 0 : i32
    %c0_i32_1 = arith.constant 0 : i32
    return %c0_i32, %c0_i32_0 : i32, i32
  }
  func.func @transform_5(%arg0: i32, %arg1: i32) -> (i32, i32) {
    %c0_i32 = arith.constant 0 : i32
    %c0_i32_0 = arith.constant 0 : i32
    %c0_i32_1 = arith.constant 0 : i32
    return %c0_i32, %c0_i32_0 : i32, i32
  }
  func.func @transform_6(%arg0: i32, %arg1: i32) -> (i32, i32) {
    %c0_i32 = arith.constant 0 : i32
    %c0_i32_0 = arith.constant 0 : i32
    %c0_i32_1 = arith.constant 0 : i32
    return %c0_i32, %c0_i32_0 : i32, i32
  }
  func.func @transform_7(%arg0: i32, %arg1: i32) -> (i32, i32, i32) {
    %c0_i32 = arith.constant 0 : i32
    %c0_i32_0 = arith.constant 0 : i32
    return %arg0, %c0_i32, %arg1 : i32, i32, i32
  }
}

</mosaic_0001>

<llo_original>
// kernel: proj_head_forward.1
$region0: #{proj_head_forward.1}
  #allocation0 [shape = 'u32[]', space=smem, size = 0x4, offset = 0x4, fixed_abs, tag = 'smem constant byte address 0x4 - core index']
  #allocation1 [shape = 'u32[144,128]{1,0:T(1,128)}', space=vmem, size = 0x12000, scoped, tag = 'internal scratch']
  %s0 = inlined_call_operand.hbm [shape: f32[2,16,256], index: 0, kind: input, shape index: {}]
  %s1 = inlined_call_operand.hbm [shape: bf16[64,16], index: 1, kind: input, shape index: {}]
  %s2 = inlined_call_operand.hbm [shape: f32[64,1], index: 2, kind: input, shape index: {}]
  %s3 = inlined_call_operand.hbm [shape: bf16[64,64], index: 3, kind: input, shape index: {}]
  %s4 = inlined_call_operand.hbm [shape: f32[64,1], index: 4, kind: input, shape index: {}]
  %s5 = inlined_call_operand.hbm [shape: bf16[32,64], index: 5, kind: input, shape index: {}]
  %s6 = inlined_call_operand.hbm [shape: f32[32,1], index: 6, kind: input, shape index: {}]
  %s7 = inlined_call_operand.hbm [shape: f32[2,32,256], index: 7, kind: output, shape index: {}]
  %s8 = sld [smem:[#allocation0]]
  $region89: #{proj_head_forward.1} parent=0
    _
  %s10 = ssub.s32 1, %s8
  %s11 = scalar_select 0, %s10, %s8
  $region1: #{proj_head_forward.1} parent=0
    #allocation2 [shape = 'u8[32768]{0}', space=vmem, size = 0x8000, scoped, tag = 'input window, operand 0']
    #allocation3 [shape = 's32[2]{0}', space=sflag, size = 0x8, scoped, tag = 'scoped memory for proj_head_forward.1']
    #allocation4 [shape = 's32[2]{0}', space=sflag, size = 0x8, scoped, tag = 'scoped memory for proj_head_forward.1']
    #allocation5 [shape = 'u8[16384]{0}', space=vmem, size = 0x4000, scoped, tag = 'input window, operand 1, single buffered']
    #allocation6 [shape = 's32[1]{0}', space=sflag, size = 0x4, scoped, tag = 'scoped memory for proj_head_forward.1']
    #allocation7 [shape = 'u8[32768]{0}', space=vmem, size = 0x8000, scoped, tag = 'input window, operand 2, single buffered']
    #allocation8 [shape = 'u8[16384]{0}', space=vmem, size = 0x4000, scoped, tag = 'input window, operand 3, single buffered']
    #allocation9 [shape = 's32[1]{0}', space=sflag, size = 0x4, scoped, tag = 'scoped memory for proj_head_forward.1']
    #allocation10 [shape = 'u8[32768]{0}', space=vmem, size = 0x8000, scoped, tag = 'input window, operand 4, single buffered']
    #allocation11 [shape = 'u8[8192]{0}', space=vmem, size = 0x2000, scoped, tag = 'input window, operand 5, single buffered']
    #allocation12 [shape = 's32[1]{0}', space=sflag, size = 0x4, scoped, tag = 'scoped memory for proj_head_forward.1']
    #allocation13 [shape = 'u8[16384]{0}', space=vmem, size = 0x4000, scoped, tag = 'input window, operand 6, single buffered']
    #allocation14 [shape = 'u8[65536]{0}', space=vmem, size = 0x10000, scoped, tag = 'output window, operand 0']
    %12 = vsyncpa [#allocation3], 0
    %s13 = scalar_lea.sflag [#allocation3], 1
    %14 = vsyncpa %s13, 0
    %15 = vsyncpa [#allocation6], 0
    %16 = vsyncpa [#allocation9], 0
    %17 = vsyncpa [#allocation12], 0
    %18 = vsyncpa [#allocation4], 0
    %s19 = scalar_lea.sflag [#allocation4], 1
    %20 = vsyncpa %s19, 0
    loop: start=0, step=1, limit=4
    $region2: #{proj_head_forward.1} parent=1 // loop_pre_header
      _
    $region3: #{proj_head_forward.1} parent=1 // loop_header
      %s22 = sphi 0, %s26
      %p23 = scmp.ge.s32.totalorder %s22, 4
      %s29 = sphi 0, %s41
      %s30 = sphi 0, %s37
      %s31 = sphi 0, %s29
      %s32 = sphi 0, %s30
      %s33 = sphi 0, %s31
      %s34 = sphi 0, %s32
      %s46 = sphi 0, %s48
      %s49 = sphi 0, %s46
      %s50 = sphi 0, %s49
      %s66 = sphi 0, %s50
      %s70 = sphi 0, %s70
      %s72 = sphi 0, %s70
      %s73 = sphi 0, %s72
      %s87 = sphi 0, %s73
      %s91 = sphi 0, %s91
      %s93 = sphi 0, %s91
      %s94 = sphi 0, %s93
      %s108 = sphi 0, %s94
      %s112 = sphi 0, %s112
      %s114 = sphi 0, %s112
      %s115 = sphi 0, %s114
      %s129 = sphi 0, %s115
      %s133 = sphi 0, %s133
      %s135 = sphi 0, %s133
      %s136 = sphi 0, %s135
      %s150 = sphi 0, %s136
      %s154 = sphi 0, %s154
      %s156 = sphi 0, %s154
      %s157 = sphi 0, %s156
      %s171 = sphi 0, %s157
      %s175 = sphi 0, %s175
      %s177 = sphi 0, %s175
      %s178 = sphi 0, %s177
      %s192 = sphi 0, %s178
      %s200 = sphi 0, %s202
      %s203 = sphi 0, %s200
      %s204 = sphi 0, %s203
      %s220 = sphi 0, %s204
    $region4: #{proj_head_forward.1} parent=1 // loop_header_branch
      %25 = sbr.rel (%p23) target = $region8
    $region5: #{proj_head_forward.1} parent=1 // loop_body
      %s27 = ssub.s32 %s22, 1
      %s28 = ssub.s32 %s22, 2
      %s35 = sadd.s32 1, %s30
      %p36 = scmp.ge.s32.totalorder %s35, 1
      %s37 = scalar_select %p36, 0, %s35
      %s38 = sadd.s32 1, %s29
      %s39 = scalar_select %p36, %s38, %s29
      %p40 = scmp.ge.s32.totalorder %s39, 2
      %s41 = scalar_select %p40, 0, %s39
      %s42 = ssub.s32 %s29, %s41
      %s43 = ssub.s32 %s30, %s37
      %s44 = sor.u32 %s42, %s43
      %p45 = scmp.eq.s32.totalorder %s44, 0
      %s47 = sadd.s32 %s46, 1
      %s48 = scalar_select %p45, %s46, %s47
      %p51 = pneg %p45
      %p52 = scmp.eq.s32.totalorder %s22, 1
      %p53 = por %p51, %p52
      %p54 = scmp.ne.s32.totalorder %s46, %s49
      %p55 = scmp.eq.s32.totalorder %s22, 0
      %p56 = por %p54, %p55
      %p57 = scmp.ne.s32.totalorder %s46, %s49
      %p58 = scmp.eq.s32.totalorder %s27, 1
      %p59 = por %p57, %p58
      %p60 = scmp.ne.s32.totalorder %s49, %s50
      %p61 = scmp.eq.s32.totalorder %s27, 0
      %p62 = por %p60, %p61
      %p63 = scmp.ne.s32.totalorder %s49, %s50
      %p64 = scmp.eq.s32.totalorder %s28, 1
      %p65 = por %p63, %p64
      %p67 = scmp.ne.s32.totalorder %s50, %s66
      %p68 = scmp.eq.s32.totalorder %s28, 0
      %p69 = por %p67, %p68
      %s71 = sadd.s32 %s70, 1
      %p74 = scmp.eq.s32.totalorder %s22, 1
      %p75 = scmp.ne.s32.totalorder %s70, %s72
      %p76 = scmp.eq.s32.totalorder %s22, 0
      %p77 = por %p75, %p76
      %p78 = scmp.ne.s32.totalorder %s70, %s72
      %p79 = scmp.eq.s32.totalorder %s27, 1
      %p80 = por %p78, %p79
      %p81 = scmp.ne.s32.totalorder %s72, %s73
      %p82 = scmp.eq.s32.totalorder %s27, 0
      %p83 = por %p81, %p82
      %p84 = scmp.ne.s32.totalorder %s72, %s73
      %p85 = scmp.eq.s32.totalorder %s28, 1
      %p86 = por %p84, %p85
      %p88 = scmp.ne.s32.totalorder %s73, %s87
      %p89 = scmp.eq.s32.totalorder %s28, 0
      %p90 = por %p88, %p89
      %s92 = sadd.s32 %s91, 1
      %p95 = scmp.eq.s32.totalorder %s22, 1
      %p96 = scmp.ne.s32.totalorder %s91, %s93
      %p97 = scmp.eq.s32.totalorder %s22, 0
      %p98 = por %p96, %p97
      %p99 = scmp.ne.s32.totalorder %s91, %s93
      %p100 = scmp.eq.s32.totalorder %s27, 1
      %p101 = por %p99, %p100
      %p102 = scmp.ne.s32.totalorder %s93, %s94
      %p103 = scmp.eq.s32.totalorder %s27, 0
      %p104 = por %p102, %p103
      %p105 = scmp.ne.s32.totalorder %s93, %s94
      %p106 = scmp.eq.s32.totalorder %s28, 1
      %p107 = por %p105, %p106
      %p109 = scmp.ne.s32.totalorder %s94, %s108
      %p110 = scmp.eq.s32.totalorder %s28, 0
      %p111 = por %p109, %p110
      %s113 = sadd.s32 %s112, 1
      %p116 = scmp.eq.s32.totalorder %s22, 1
      %p117 = scmp.ne.s32.totalorder %s112, %s114
      %p118 = scmp.eq.s32.totalorder %s22, 0
      %p119 = por %p117, %p118
      %p120 = scmp.ne.s32.totalorder %s112, %s114
      %p121 = scmp.eq.s32.totalorder %s27, 1
      %p122 = por %p120, %p121
      %p123 = scmp.ne.s32.totalorder %s114, %s115
      %p124 = scmp.eq.s32.totalorder %s27, 0
      %p125 = por %p123, %p124
      %p126 = scmp.ne.s32.totalorder %s114, %s115
      %p127 = scmp.eq.s32.totalorder %s28, 1
      %p128 = por %p126, %p127
      %p130 = scmp.ne.s32.totalorder %s115, %s129
      %p131 = scmp.eq.s32.totalorder %s28, 0
      %p132 = por %p130, %p131
      %s134 = sadd.s32 %s133, 1
      %p137 = scmp.eq.s32.totalorder %s22, 1
      %p138 = scmp.ne.s32.totalorder %s133, %s135
      %p139 = scmp.eq.s32.totalorder %s22, 0
      %p140 = por %p138, %p139
      %p141 = scmp.ne.s32.totalorder %s133, %s135
      %p142 = scmp.eq.s32.totalorder %s27, 1
      %p143 = por %p141, %p142
      %p144 = scmp.ne.s32.totalorder %s135, %s136
      %p145 = scmp.eq.s32.totalorder %s27, 0
      %p146 = por %p144, %p145
      %p147 = scmp.ne.s32.totalorder %s135, %s136
      %p148 = scmp.eq.s32.totalorder %s28, 1
      %p149 = por %p147, %p148
      %p151 = scmp.ne.s32.totalorder %s136, %s150
      %p152 = scmp.eq.s32.totalorder %s28, 0
      %p153 = por %p151, %p152
      %s155 = sadd.s32 %s154, 1
      %p158 = scmp.eq.s32.totalorder %s22, 1
      %p159 = scmp.ne.s32.totalorder %s154, %s156
      %p160 = scmp.eq.s32.totalorder %s22, 0
      %p161 = por %p159, %p160
      %p162 = scmp.ne.s32.totalorder %s154, %s156
      %p163 = scmp.eq.s32.totalorder %s27, 1
      %p164 = por %p162, %p163
      %p165 = scmp.ne.s32.totalorder %s156, %s157
      %p166 = scmp.eq.s32.totalorder %s27, 0
      %p167 = por %p165, %p166
      %p168 = scmp.ne.s32.totalorder %s156, %s157
      %p169 = scmp.eq.s32.totalorder %s28, 1
      %p170 = por %p168, %p169
      %p172 = scmp.ne.s32.totalorder %s157, %s171
      %p173 = scmp.eq.s32.totalorder %s28, 0
      %p174 = por %p172, %p173
      %s176 = sadd.s32 %s175, 1
      %p179 = scmp.eq.s32.totalorder %s22, 1
      %p180 = scmp.ne.s32.totalorder %s175, %s177
      %p181 = scmp.eq.s32.totalorder %s22, 0
      %p182 = por %p180, %p181
      %p183 = scmp.ne.s32.totalorder %s175, %s177
      %p184 = scmp.eq.s32.totalorder %s27, 1
      %p185 = por %p183, %p184
      %p186 = scmp.ne.s32.totalorder %s177, %s178
      %p187 = scmp.eq.s32.totalorder %s27, 0
      %p188 = por %p186, %p187
      %p189 = scmp.ne.s32.totalorder %s177, %s178
      %p190 = scmp.eq.s32.totalorder %s28, 1
      %p191 = por %p189, %p190
      %p193 = scmp.ne.s32.totalorder %s178, %s192
      %p194 = scmp.eq.s32.totalorder %s28, 0
      %p195 = por %p193, %p194
      %s196 = ssub.s32 %s29, %s41
      %s197 = ssub.s32 %s30, %s37
      %s198 = sor.u32 %s196, %s197
      %p199 = scmp.eq.s32.totalorder %s198, 0
      %s201 = sadd.s32 %s200, 1
      %s202 = scalar_select %p199, %s200, %s201
      %p205 = pneg %p199
      %p206 = scmp.eq.s32.totalorder %s22, 1
      %p207 = por %p205, %p206
      %p208 = scmp.ne.s32.totalorder %s200, %s203
      %p209 = scmp.eq.s32.totalorder %s22, 0
      %p210 = por %p208, %p209
      %p211 = scmp.ne.s32.totalorder %s200, %s203
      %p212 = scmp.eq.s32.totalorder %s27, 1
      %p213 = por %p211, %p212
      %p214 = scmp.ne.s32.totalorder %s203, %s204
      %p215 = scmp.eq.s32.totalorder %s27, 0
      %p216 = por %p214, %p215
      %p217 = scmp.ne.s32.totalorder %s203, %s204
      %p218 = scmp.eq.s32.totalorder %s28, 1
      %p219 = por %p217, %p218
      %p221 = scmp.ne.s32.totalorder %s204, %s220
      %p222 = scmp.eq.s32.totalorder %s28, 0
      %p223 = por %p221, %p222
      %p224 = scmp.le.s32.totalorder 1, %s22
      %p225 = scmp.lt.s32.totalorder %s22, 3
      %p226 = pnand %p224, %p225
      %p227 = pneg %p226
      // Predicated region
      $region9: #{proj_head_forward.1} parent=5 // pred_check
        _
      $region10: #{proj_head_forward.1} parent=5 // pred_check_branch
        %229 = sbr.rel (%p226) target = $region12
      $region11: #{proj_head_forward.1} parent=5 // pred_region
        %s230 = ssub.s32 %s22, 1
        // Predicated region
        $region13: #{proj_head_forward.1} parent=11 // pred_check
          %p231 = pneg %p83
        $region14: #{proj_head_forward.1} parent=11 // pred_check_branch
          %233 = sbr.rel (%p231) target = $region16
        $region15: #{proj_head_forward.1} parent=11 // pred_region
          %s235 = ssub.s32 512, 512
          %236 = vsyncadd [#allocation6], %s235
          %s237 = sshll.u32 [#allocation5], 4
          %s238 = int_to_ptr.vmem [resolvable:$true] %s237
          %243 = dma.hbm_to_vmem [thread:$0]  %s1, 512, %s238, [#allocation6], 64, 64, 4
        $region16: #{proj_head_forward.1} parent=11 // pred_fallthru
          _
        // Predicated region
        $region17: #{proj_head_forward.1} parent=11 // pred_check
          %p244 = pneg %p104
        $region18: #{proj_head_forward.1} parent=11 // pred_check_branch
          %246 = sbr.rel (%p244) target = $region20
        $region19: #{proj_head_forward.1} parent=11 // pred_region
          %s248 = ssub.s32 1024, 1024
          %249 = vsyncadd [#allocation6], %s248
          %s250 = sshll.u32 [#allocation7], 4
          %s251 = int_to_ptr.vmem [resolvable:$true] %s250
          %256 = dma.hbm_to_vmem [thread:$0]  %s2, 1024, %s251, [#allocation6], 128, 128, 8
        $region20: #{proj_head_forward.1} parent=11 // pred_fallthru
          _
        // Predicated region
        $region21: #{proj_head_forward.1} parent=11 // pred_check
          %p257 = pneg %p125
        $region22: #{proj_head_forward.1} parent=11 // pred_check_branch
          %259 = sbr.rel (%p257) target = $region24
        $region23: #{proj_head_forward.1} parent=11 // pred_region
          %s261 = ssub.s32 512, 512
          %262 = vsyncadd [#allocation9], %s261
          %s263 = sshll.u32 [#allocation8], 4
          %s264 = int_to_ptr.vmem [resolvable:$true] %s263
          %269 = dma.hbm_to_vmem [thread:$0]  %s3, 512, %s264, [#allocation9], 64, 64, 4
        $region24: #{proj_head_forward.1} parent=11 // pred_fallthru
          _
        // Predicated region
        $region25: #{proj_head_forward.1} parent=11 // pred_check
          %p270 = pneg %p146
        $region26: #{proj_head_forward.1} parent=11 // pred_check_branch
          %272 = sbr.rel (%p270) target = $region28
        $region27: #{proj_head_forward.1} parent=11 // pred_region
          %s274 = ssub.s32 1024, 1024
          %275 = vsyncadd [#allocation9], %s274
          %s276 = sshll.u32 [#allocation10], 4
          %s277 = int_to_ptr.vmem [resolvable:$true] %s276
          %282 = dma.hbm_to_vmem [thread:$0]  %s4, 1024, %s277, [#allocation9], 128, 128, 8
        $region28: #{proj_head_forward.1} parent=11 // pred_fallthru
          _
        // Predicated region
        $region29: #{proj_head_forward.1} parent=11 // pred_check
          %p283 = pneg %p167
        $region30: #{proj_head_forward.1} parent=11 // pred_check_branch
          %285 = sbr.rel (%p283) target = $region32
        $region31: #{proj_head_forward.1} parent=11 // pred_region
          %s287 = ssub.s32 256, 256
          %288 = vsyncadd [#allocation12], %s287
          %s289 = sshll.u32 [#allocation11], 4
          %s290 = int_to_ptr.vmem [resolvable:$true] %s289
          %295 = dma.hbm_to_vmem [thread:$0]  %s5, 256, %s290, [#allocation12], 64, 64, 4
        $region32: #{proj_head_forward.1} parent=11 // pred_fallthru
          _
        // Predicated region
        $region33: #{proj_head_forward.1} parent=11 // pred_check
          %p296 = pneg %p188
        $region34: #{proj_head_forward.1} parent=11 // pred_check_branch
          %298 = sbr.rel (%p296) target = $region36
        $region35: #{proj_head_forward.1} parent=11 // pred_region
          %s300 = ssub.s32 512, 512
          %301 = vsyncadd [#allocation12], %s300
          %s302 = sshll.u32 [#allocation13], 4
          %s303 = int_to_ptr.vmem [resolvable:$true] %s302
          %308 = dma.hbm_to_vmem [thread:$0]  %s6, 512, %s303, [#allocation12], 128, 128, 8
        $region36: #{proj_head_forward.1} parent=11 // pred_fallthru
          _
      $region12: #{proj_head_forward.1} parent=5 // pred_fallthru
        _
      %p309 = scmp.lt.s32.totalorder %s22, 2
      // Predicated region
      $region37: #{proj_head_forward.1} parent=5 // pred_check
        %p310 = pneg %p309
      $region38: #{proj_head_forward.1} parent=5 // pred_check_branch
        %312 = sbr.rel (%p310) target = $region40
      $region39: #{proj_head_forward.1} parent=5 // pred_region
        // Predicated region
        $region41: #{proj_head_forward.1} parent=39 // pred_check
          %p313 = pneg %p56
        $region42: #{proj_head_forward.1} parent=39 // pred_check_branch
          %315 = sbr.rel (%p313) target = $region44
        $region43: #{proj_head_forward.1} parent=39 // pred_region
          %s316 = sand.u32 %s46, 1
          %s317 = scalar_lea.sflag [#allocation3], %s316
          %s318 = sand.u32 %s46, 1
          %s319 = smul.addr %s318, 32
          %s320 = scalar_lea.vmem [#allocation2], %s319
          %s321 = smul.u32 2, %s30
          %s323 = ssub.s32 512, 512
          %324 = vsyncadd %s317, %s323
          %s325 = smul.addr %s29, 4
          %s326 = sadd.s32 %s321, %s325
          %s327 = smul.addr %s326, 128
          %s328 = scalar_lea.hbm %s0, %s327
          %s329 = sshll.u32 %s320, 4
          %s330 = int_to_ptr.vmem [resolvable:$true] %s329
          %335 = dma.hbm_to_vmem [thread:$0]  %s328, 512, %s330, %s317, 256, 256, 16
        $region44: #{proj_head_forward.1} parent=39 // pred_fallthru
          _
      $region40: #{proj_head_forward.1} parent=5 // pred_fallthru
        _
      %p336 = scmp.le.s32.totalorder 1, %s22
      %p337 = scmp.lt.s32.totalorder %s22, 3
      %p338 = pnand %p336, %p337
      %p339 = pneg %p338
      // Predicated region
      $region45: #{proj_head_forward.1} parent=5 // pred_check
        _
      $region46: #{proj_head_forward.1} parent=5 // pred_check_branch
        %341 = sbr.rel (%p338) target = $region48
      $region47: #{proj_head_forward.1} parent=5 // pred_region
        %s342 = ssub.s32 %s22, 1
        %s343 = sand.u32 %s49, 1
        %s344 = scalar_lea.sflag [#allocation3], %s343
        %s345 = sand.u32 %s49, 1
        %s346 = smul.addr %s345, 32
        %s347 = scalar_lea.vmem [#allocation2], %s346
        // Predicated region
        $region49: #{proj_head_forward.1} parent=47 // pred_check
          %p348 = pneg %p62
        $region50: #{proj_head_forward.1} parent=47 // pred_check_branch
          %350 = sbr.rel (%p348) target = $region52
        $region51: #{proj_head_forward.1} parent=47 // pred_region
          %351 = dma.done %s344, 512
        $region52: #{proj_head_forward.1} parent=47 // pred_fallthru
          _
        // Predicated region
        $region53: #{proj_head_forward.1} parent=47 // pred_check
          %p352 = pneg %p83
        $region54: #{proj_head_forward.1} parent=47 // pred_check_branch
          %354 = sbr.rel (%p352) target = $region56
        $region55: #{proj_head_forward.1} parent=47 // pred_region
          %355 = dma.done [#allocation6], 512
        $region56: #{proj_head_forward.1} parent=47 // pred_fallthru
          _
        // Predicated region
        $region57: #{proj_head_forward.1} parent=47 // pred_check
          %p356 = pneg %p104
        $region58: #{proj_head_forward.1} parent=47 // pred_check_branch
          %358 = sbr.rel (%p356) target = $region60
        $region59: #{proj_head_forward.1} parent=47 // pred_region
          %359 = dma.done [#allocation6], 1024
        $region60: #{proj_head_forward.1} parent=47 // pred_fallthru
          _
        // Predicated region
        $region61: #{proj_head_forward.1} parent=47 // pred_check
          %p360 = pneg %p125
        $region62: #{proj_head_forward.1} parent=47 // pred_check_branch
          %362 = sbr.rel (%p360) target = $region64
        $region63: #{proj_head_forward.1} parent=47 // pred_region
          %363 = dma.done [#allocation9], 512
        $region64: #{proj_head_forward.1} parent=47 // pred_fallthru
          _
        // Predicated region
        $region65: #{proj_head_forward.1} parent=47 // pred_check
          %p364 = pneg %p146
        $region66: #{proj_head_forward.1} parent=47 // pred_check_branch
          %366 = sbr.rel (%p364) target = $region68
        $region67: #{proj_head_forward.1} parent=47 // pred_region
          %367 = dma.done [#allocation9], 1024
        $region68: #{proj_head_forward.1} parent=47 // pred_fallthru
          _
        // Predicated region
        $region69: #{proj_head_forward.1} parent=47 // pred_check
          %p368 = pneg %p167
        $region70: #{proj_head_forward.1} parent=47 // pred_check_branch
          %370 = sbr.rel (%p368) target = $region72
        $region71: #{proj_head_forward.1} parent=47 // pred_region
          %371 = dma.done [#allocation12], 256
        $region72: #{proj_head_forward.1} parent=47 // pred_fallthru
          _
        // Predicated region
        $region73: #{proj_head_forward.1} parent=47 // pred_check
          %p372 = pneg %p188
        $region74: #{proj_head_forward.1} parent=47 // pred_check_branch
          %374 = sbr.rel (%p372) target = $region76
        $region75: #{proj_head_forward.1} parent=47 // pred_region
          %375 = dma.done [#allocation12], 512
        $region76: #{proj_head_forward.1} parent=47 // pred_fallthru
          _
        %s376 = sand.u32 %s49, 1
        %s377 = scalar_lea.sflag [#allocation3], %s376
        %s378 = sand.u32 %s49, 1
        %s379 = smul.addr %s378, 32
        %s380 = scalar_lea.vmem [#allocation2], %s379
        %p381 = pneg %p62
        %p382 = pneg %p59
        %p383 = pneg %p83
        %p384 = pneg %p80
        %p385 = pneg %p104
        %p386 = pneg %p101
        %p387 = pneg %p125
        %p388 = pneg %p122
        %p389 = pneg %p146
        %p390 = pneg %p143
        %p391 = pneg %p167
        %p392 = pneg %p164
        %p393 = pneg %p188
        %p394 = pneg %p185
        %p395 = pneg %p216
        %p396 = pneg %p213
        %s397 = sand.u32 %s203, 1
        %s398 = scalar_lea.sflag [#allocation4], %s397
        %s399 = sand.u32 %s203, 1
        %s400 = smul.addr %s399, 64
        %s401 = scalar_lea.vmem [#allocation14], %s400
        %s402 = smul.u32 2, %s32
        %s403 = smul.u32 2, %s32
        %v405 = vld [vmem:[%s347] sm:$0xff]
        %v406 = vld [vmem:[%s347 + $0x8] sm:$0xff]
        %v407 = vld [vmem:[%s347 + $0x10] sm:$0xff]
        %v408 = vld [vmem:[%s347 + $0x18] sm:$0xff]
        %v409 = vpack.c.bf16 %v407, %v405
        %v410 = vpack.c.bf16 %v408, %v406
        %v411 = vld [vmem:[#allocation5] sm:$0xf]
        %v412 = vld [vmem:[#allocation5 + $0x4] sm:$0xf]
        %v413 = vld [vmem:[#allocation5 + $0x8] sm:$0xf]
        %v414 = vld [vmem:[#allocation5 + $0xc] sm:$0xf]
        %v415 = vld [vmem:[#allocation5 + $0x10] sm:$0xf]
        %v416 = vld [vmem:[#allocation5 + $0x14] sm:$0xf]
        %v417 = vld [vmem:[#allocation5 + $0x18] sm:$0xf]
        %v418 = vld [vmem:[#allocation5 + $0x1c] sm:$0xf]
        %v419 = vld [vmem:[#allocation7] sm:$0xff]
        %v420 = vld [vmem:[#allocation7 + $0x8] sm:$0xff]
        %v421 = vld [vmem:[#allocation7 + $0x10] sm:$0xff]
        %v422 = vld [vmem:[#allocation7 + $0x18] sm:$0xff]
        %v423 = vld [vmem:[#allocation7 + $0x20] sm:$0xff]
        %v424 = vld [vmem:[#allocation7 + $0x28] sm:$0xff]
        %v425 = vld [vmem:[#allocation7 + $0x30] sm:$0xff]
        %v426 = vld [vmem:[#allocation7 + $0x38] sm:$0xff]
        %428 = vset.pattern.permute.xlu0 0
        %429 = vperm.xlu0 %428, %v419
        %v430 = vpop.permute.xlu0 %429
        %433 = vset.pattern.permute.xlu0 0
        %434 = vperm.xlu0 %433, %v420
        %v435 = vpop.permute.xlu0 %434
        %438 = vset.pattern.permute.xlu0 0
        %439 = vperm.xlu0 %438, %v421
        %v440 = vpop.permute.xlu0 %439
        %443 = vset.pattern.permute.xlu0 0
        %444 = vperm.xlu0 %443, %v422
        %v445 = vpop.permute.xlu0 %444
        %448 = vset.pattern.permute.xlu0 0
        %449 = vperm.xlu0 %448, %v423
        %v450 = vpop.permute.xlu0 %449
        %453 = vset.pattern.permute.xlu0 0
        %454 = vperm.xlu0 %453, %v424
        %v455 = vpop.permute.xlu0 %454
        %458 = vset.pattern.permute.xlu0 0
        %459 = vperm.xlu0 %458, %v425
        %v460 = vpop.permute.xlu0 %459
        %463 = vset.pattern.permute.xlu0 0
        %464 = vperm.xlu0 %463, %v426
        %v465 = vpop.permute.xlu0 %464
        %v475 = vunpack.c.l.b16 %v411
        %v476 = vunpack.c.l.b16 %v412
        %v477 = vunpack.c.l.b16 %v413
        %v478 = vunpack.c.l.b16 %v414
        %v479 = vunpack.c.l.b16 %v415
        %v480 = vunpack.c.l.b16 %v416
        %v481 = vunpack.c.l.b16 %v417
        %v482 = vunpack.c.l.b16 %v418
        %v483 = vpack.c.b16 %v476, %v475
        %v484 = vpack.c.b16 %v478, %v477
        %v485 = vpack.c.b16 %v480, %v479
        %v486 = vpack.c.b16 %v482, %v481
        %vm487 = vcmask 130048
        %v489 = vsel %vm487, %v483, 0
        %v492 = vsel %vm487, %v484, 0
        %v495 = vsel %vm487, %v485, 0
        %v498 = vsel %vm487, %v486, 0
        %500 = vmatprep.subr.bf16.mxu0 %v410
        %501 = vmatpush1.bf16.msra.mxu0 %v409
        %502 = vmatprep.subr.bf16.mxu0 0
        %503 = vmatpush1.bf16.msra.mxu0 0
        %504 = vmatprep.subr.bf16.mxu0 0
        %505 = vmatpush1.bf16.msra.mxu0 0
        %506 = vmatprep.subr.bf16.mxu0 0
        %507 = vmatpush1.bf16.msra.mxu0 0
        %508 = vmatprep.subr.bf16.mxu0 0
        %509 = vmatpush1.bf16.msra.mxu0 0
        %510 = vmatprep.subr.bf16.mxu0 0
        %511 = vmatpush1.bf16.msra.mxu0 0
        %512 = vmatprep.subr.bf16.mxu0 0
        %513 = vmatpush1.bf16.msra.mxu0 0
        %514 = vmatprep.subr.bf16.mxu0 0
        %515 = vmatpush1.bf16.msra.mxu0 0
        %516 = vmatprep.subr.bf16.mxu0 0
        %517 = vmatpush1.bf16.msra.mxu0 0
        %518 = vmatprep.subr.bf16.mxu0 0
        %519 = vmatpush1.bf16.msra.mxu0 0
        %520 = vmatprep.subr.bf16.mxu0 0
        %521 = vmatpush1.bf16.msra.mxu0 0
        %522 = vmatprep.subr.bf16.mxu0 0
        %523 = vmatpush1.bf16.msra.mxu0 0
        %524 = vmatprep.subr.bf16.mxu0 0
        %525 = vmatpush1.bf16.msra.mxu0 0
        %526 = vmatprep.subr.bf16.mxu0 0
        %527 = vmatpush1.bf16.msra.mxu0 0
        %528 = vmatprep.subr.bf16.mxu0 0
        %529 = vmatpush1.bf16.msra.mxu0 0
        %530 = vmatprep.subr.bf16.mxu0 0
        %531 = vmatpush1.bf16.msra.mxu0 0
        %532 = vmatprep.mubr.bf16.mxu0 0
        %533 = vmatmul.mubr.bf16.gmra.mrb[0].mxu0 %v489
        %v534 = vpop.f32.mrb[0].mxu0
        %v535 = vadd.f32 %v430, %v534
        %v536 = vpop.f32.mrb[0].mxu0
        %v537 = vadd.f32 %v430, %v536
        %v538 = vpop.f32.mrb[0].mxu0
        %v539 = vadd.f32 %v435, %v538
        %v540 = vpop.f32.mrb[0].mxu0
        %v541 = vadd.f32 %v435, %v540
        %542 = vmatprep.mubr.bf16.mxu0 0
        %543 = vmatmul.mubr.bf16.gmra.mrb[0].mxu0 %v492
        %v544 = vpop.f32.mrb[0].mxu0
        %v545 = vadd.f32 %v440, %v544
        %v546 = vpop.f32.mrb[0].mxu0
        %v547 = vadd.f32 %v440, %v546
        %v548 = vpop.f32.mrb[0].mxu0
        %v549 = vadd.f32 %v445, %v548
        %v550 = vpop.f32.mrb[0].mxu0
        %v551 = vadd.f32 %v445, %v550
        %552 = vmatprep.mubr.bf16.mxu0 0
        %553 = vmatmul.mubr.bf16.gmra.mrb[0].mxu0 %v495
        %v554 = vpop.f32.mrb[0].mxu0
        %v555 = vadd.f32 %v450, %v554
        %v556 = vpop.f32.mrb[0].mxu0
        %v557 = vadd.f32 %v450, %v556
        %v558 = vpop.f32.mrb[0].mxu0
        %v559 = vadd.f32 %v455, %v558
        %v560 = vpop.f32.mrb[0].mxu0
        %v561 = vadd.f32 %v455, %v560
        %562 = vmatprep.mubr.bf16.mxu0 0
        %563 = vmatmul.mubr.bf16.gmra.mrb[0].mxu0 %v498
        %v564 = vpop.f32.mrb[0].mxu0
        %v565 = vadd.f32 %v460, %v564
        %v566 = vpop.f32.mrb[0].mxu0
        %v567 = vadd.f32 %v460, %v566
        %v568 = vpop.f32.mrb[0].mxu0
        %v569 = vadd.f32 %v465, %v568
        %v570 = vpop.f32.mrb[0].mxu0
        %v571 = vadd.f32 %v465, %v570
        %572 = vdwg.mxu0
        %v573 = vmul.f32 %v535, 0.5
        %v574 = vmul.f32 %v537, 0.5
        %v575 = vmul.f32 %v539, 0.5
        %v576 = vmul.f32 %v541, 0.5
        %v577 = vmul.f32 %v545, 0.5
        %v578 = vmul.f32 %v547, 0.5
        %v579 = vmul.f32 %v549, 0.5
        %v580 = vmul.f32 %v551, 0.5
        %v581 = vmul.f32 %v555, 0.5
        %v582 = vmul.f32 %v557, 0.5
        %v583 = vmul.f32 %v559, 0.5
        %v584 = vmul.f32 %v561, 0.5
        %v585 = vmul.f32 %v565, 0.5
        %v586 = vmul.f32 %v567, 0.5
        %v587 = vmul.f32 %v569, 0.5
        %v588 = vmul.f32 %v571, 0.5
        %v589 = vmul.f32 %v535, 0.70710677
        %v590 = vmul.f32 %v537, 0.70710677
        %v591 = vmul.f32 %v539, 0.70710677
        %v592 = vmul.f32 %v541, 0.70710677
        %v593 = vmul.f32 %v545, 0.70710677
        %v594 = vmul.f32 %v547, 0.70710677
        %v595 = vmul.f32 %v549, 0.70710677
        %v596 = vmul.f32 %v551, 0.70710677
        %v597 = vmul.f32 %v555, 0.70710677
        %v598 = vmul.f32 %v557, 0.70710677
        %v599 = vmul.f32 %v559, 0.70710677
        %v600 = vmul.f32 %v561, 0.70710677
        %v601 = vmul.f32 %v565, 0.70710677
        %v602 = vmul.f32 %v567, 0.70710677
        %v603 = vmul.f32 %v569, 0.70710677
        %v604 = vmul.f32 %v571, 0.70710677
        %v605 = verf.f32.pop %v589
        %v606 = verf.f32.pop %v590
        %v607 = verf.f32.pop %v591
        %v608 = verf.f32.pop %v592
        %v609 = verf.f32.pop %v593
        %v610 = verf.f32.pop %v594
        %v611 = verf.f32.pop %v595
        %v612 = verf.f32.pop %v596
        %v613 = verf.f32.pop %v597
        %v614 = verf.f32.pop %v598
        %v615 = verf.f32.pop %v599
        %v616 = verf.f32.pop %v600
        %v617 = verf.f32.pop %v601
        %v618 = verf.f32.pop %v602
        %v619 = verf.f32.pop %v603
        %v620 = verf.f32.pop %v604
        %v621 = vadd.f32 %v605, 1.0
        %v622 = vadd.f32 %v606, 1.0
        %v623 = vadd.f32 %v607, 1.0
        %v624 = vadd.f32 %v608, 1.0
        %v625 = vadd.f32 %v609, 1.0
        %v626 = vadd.f32 %v610, 1.0
        %v627 = vadd.f32 %v611, 1.0
        %v628 = vadd.f32 %v612, 1.0
        %v629 = vadd.f32 %v613, 1.0
        %v630 = vadd.f32 %v614, 1.0
        %v631 = vadd.f32 %v615, 1.0
        %v632 = vadd.f32 %v616, 1.0
        %v633 = vadd.f32 %v617, 1.0
        %v634 = vadd.f32 %v618, 1.0
        %v635 = vadd.f32 %v619, 1.0
        %v636 = vadd.f32 %v620, 1.0
        %v637 = vmul.f32 %v573, %v621
        %v638 = vmul.f32 %v574, %v622
        %v639 = vmul.f32 %v575, %v623
        %v640 = vmul.f32 %v576, %v624
        %v641 = vmul.f32 %v577, %v625
        %v642 = vmul.f32 %v578, %v626
        %v643 = vmul.f32 %v579, %v627
        %v644 = vmul.f32 %v580, %v628
        %v645 = vmul.f32 %v581, %v629
        %v646 = vmul.f32 %v582, %v630
        %v647 = vmul.f32 %v583, %v631
        %v648 = vmul.f32 %v584, %v632
        %v649 = vmul.f32 %v585, %v633
        %v650 = vmul.f32 %v586, %v634
        %v651 = vmul.f32 %v587, %v635
        %v652 = vmul.f32 %v588, %v636
        %v653 = vld [vmem:[#allocation8] sm:$0xf]
        %v654 = vld [vmem:[#allocation8 + $0x4] sm:$0xf]
        %v655 = vld [vmem:[#allocation8 + $0x8] sm:$0xf]
        %v656 = vld [vmem:[#allocation8 + $0xc] sm:$0xf]
        %v657 = vld [vmem:[#allocation8 + $0x10] sm:$0xf]
        %v658 = vld [vmem:[#allocation8 + $0x14] sm:$0xf]
        %v659 = vld [vmem:[#allocation8 + $0x18] sm:$0xf]
        %v660 = vld [vmem:[#allocation8 + $0x1c] sm:$0xf]
        %v661 = vpack.c.bf16 %v639, %v637
        %v662 = vpack.c.bf16 %v640, %v638
        %v663 = vpack.c.bf16 %v643, %v641
        %v664 = vpack.c.bf16 %v644, %v642
        %v665 = vpack.c.bf16 %v647, %v645
        %v666 = vpack.c.bf16 %v648, %v646
        %v667 = vpack.c.bf16 %v651, %v649
        %v668 = vpack.c.bf16 %v652, %v650
        %v669 = vld [vmem:[#allocation10] sm:$0xff]
        %v670 = vld [vmem:[#allocation10 + $0x8] sm:$0xff]
        %v671 = vld [vmem:[#allocation10 + $0x10] sm:$0xff]
        %v672 = vld [vmem:[#allocation10 + $0x18] sm:$0xff]
        %v673 = vld [vmem:[#allocation10 + $0x20] sm:$0xff]
        %v674 = vld [vmem:[#allocation10 + $0x28] sm:$0xff]
        %v675 = vld [vmem:[#allocation10 + $0x30] sm:$0xff]
        %v676 = vld [vmem:[#allocation10 + $0x38] sm:$0xff]
        %678 = vset.pattern.permute.xlu0 0
        %679 = vperm.xlu0 %678, %v669
        %v680 = vpop.permute.xlu0 %679
        %683 = vset.pattern.permute.xlu0 0
        %684 = vperm.xlu0 %683, %v670
        %v685 = vpop.permute.xlu0 %684
        %688 = vset.pattern.permute.xlu0 0
        %689 = vperm.xlu0 %688, %v671
        %v690 = vpop.permute.xlu0 %689
        %693 = vset.pattern.permute.xlu0 0
        %694 = vperm.xlu0 %693, %v672
        %v695 = vpop.permute.xlu0 %694
        %698 = vset.pattern.permute.xlu0 0
        %699 = vperm.xlu0 %698, %v673
        %v700 = vpop.permute.xlu0 %699
        %703 = vset.pattern.permute.xlu0 0
        %704 = vperm.xlu0 %703, %v674
        %v705 = vpop.permute.xlu0 %704
        %708 = vset.pattern.permute.xlu0 0
        %709 = vperm.xlu0 %708, %v675
        %v710 = vpop.permute.xlu0 %709
        %713 = vset.pattern.permute.xlu0 0
        %714 = vperm.xlu0 %713, %v676
        %v715 = vpop.permute.xlu0 %714
        %v725 = vunpack.c.l.b16 %v653
        %v726 = vunpack.c.l.b16 %v654
        %v727 = vunpack.c.l.b16 %v655
        %v728 = vunpack.c.l.b16 %v656
        %v729 = vunpack.c.l.b16 %v657
        %v730 = vunpack.c.l.b16 %v658
        %v731 = vunpack.c.l.b16 %v659
        %v732 = vunpack.c.l.b16 %v660
        %v733 = vpack.c.b16 %v726, %v725
        %v734 = vpack.c.b16 %v728, %v727
        %v735 = vpack.c.b16 %v730, %v729
        %v736 = vpack.c.b16 %v732, %v731
        %vm737 = vcmask 523264
        %v739 = vsel %vm737, %v733, 0
        %v742 = vsel %vm737, %v734, 0
        %v745 = vsel %vm737, %v735, 0
        %v748 = vsel %vm737, %v736, 0
        %750 = vmatprep.subr.bf16.mxu0 %v662
        %751 = vmatpush1.bf16.msra.mxu0 %v661
        %752 = vmatprep.subr.bf16.mxu0 %v664
        %753 = vmatpush1.bf16.msra.mxu0 %v663
        %754 = vmatprep.subr.bf16.mxu0 %v666
        %755 = vmatpush1.bf16.msra.mxu0 %v665
        %756 = vmatprep.subr.bf16.mxu0 %v668
        %757 = vmatpush1.bf16.msra.mxu0 %v667
        %758 = vmatprep.subr.bf16.mxu0 0
        %759 = vmatpush1.bf16.msra.mxu0 0
        %760 = vmatprep.subr.bf16.mxu0 0
        %761 = vmatpush1.bf16.msra.mxu0 0
        %762 = vmatprep.subr.bf16.mxu0 0
        %763 = vmatpush1.bf16.msra.mxu0 0
        %764 = vmatprep.subr.bf16.mxu0 0
        %765 = vmatpush1.bf16.msra.mxu0 0
        %766 = vmatprep.subr.bf16.mxu0 0
        %767 = vmatpush1.bf16.msra.mxu0 0
        %768 = vmatprep.subr.bf16.mxu0 0
        %769 = vmatpush1.bf16.msra.mxu0 0
        %770 = vmatprep.subr.bf16.mxu0 0
        %771 = vmatpush1.bf16.msra.mxu0 0
        %772 = vmatprep.subr.bf16.mxu0 0
        %773 = vmatpush1.bf16.msra.mxu0 0
        %774 = vmatprep.subr.bf16.mxu0 0
        %775 = vmatpush1.bf16.msra.mxu0 0
        %776 = vmatprep.subr.bf16.mxu0 0
        %777 = vmatpush1.bf16.msra.mxu0 0
        %778 = vmatprep.subr.bf16.mxu0 0
        %779 = vmatpush1.bf16.msra.mxu0 0
        %780 = vmatprep.subr.bf16.mxu0 0
        %781 = vmatpush1.bf16.msra.mxu0 0
        %782 = vmatprep.mubr.bf16.mxu0 0
        %783 = vmatmul.mubr.bf16.gmra.mrb[0].mxu0 %v739
        %v784 = vpop.f32.mrb[0].mxu0
        %v785 = vadd.f32 %v680, %v784
        %v786 = vpop.f32.mrb[0].mxu0
        %v787 = vadd.f32 %v680, %v786
        %v788 = vpop.f32.mrb[0].mxu0
        %v789 = vadd.f32 %v685, %v788
        %v790 = vpop.f32.mrb[0].mxu0
        %v791 = vadd.f32 %v685, %v790
        %792 = vmatprep.mubr.bf16.mxu0 0
        %793 = vmatmul.mubr.bf16.gmra.mrb[0].mxu0 %v742
        %v794 = vpop.f32.mrb[0].mxu0
        %v795 = vadd.f32 %v690, %v794
        %v796 = vpop.f32.mrb[0].mxu0
        %v797 = vadd.f32 %v690, %v796
        %v798 = vpop.f32.mrb[0].mxu0
        %v799 = vadd.f32 %v695, %v798
        %v800 = vpop.f32.mrb[0].mxu0
        %v801 = vadd.f32 %v695, %v800
        %802 = vmatprep.mubr.bf16.mxu0 0
        %803 = vmatmul.mubr.bf16.gmra.mrb[0].mxu0 %v745
        %v804 = vpop.f32.mrb[0].mxu0
        %v805 = vadd.f32 %v700, %v804
        %v806 = vpop.f32.mrb[0].mxu0
        %v807 = vadd.f32 %v700, %v806
        %v808 = vpop.f32.mrb[0].mxu0
        %v809 = vadd.f32 %v705, %v808
        %v810 = vpop.f32.mrb[0].mxu0
        %v811 = vadd.f32 %v705, %v810
        %812 = vmatprep.mubr.bf16.mxu0 0
        %813 = vmatmul.mubr.bf16.gmra.mrb[0].mxu0 %v748
        %v814 = vpop.f32.mrb[0].mxu0
        %v815 = vadd.f32 %v710, %v814
        %v816 = vpop.f32.mrb[0].mxu0
        %v817 = vadd.f32 %v710, %v816
        %v818 = vpop.f32.mrb[0].mxu0
        %v819 = vadd.f32 %v715, %v818
        %v820 = vpop.f32.mrb[0].mxu0
        %v821 = vadd.f32 %v715, %v820
        %822 = vdwg.mxu0
        %v823 = vmul.f32 %v785, 0.5
        %v824 = vmul.f32 %v787, 0.5
        %v825 = vmul.f32 %v789, 0.5
        %v826 = vmul.f32 %v791, 0.5
        %v827 = vmul.f32 %v795, 0.5
        %v828 = vmul.f32 %v797, 0.5
        %v829 = vmul.f32 %v799, 0.5
        %v830 = vmul.f32 %v801, 0.5
        %v831 = vmul.f32 %v805, 0.5
        %v832 = vmul.f32 %v807, 0.5
        %v833 = vmul.f32 %v809, 0.5
        %v834 = vmul.f32 %v811, 0.5
        %v835 = vmul.f32 %v815, 0.5
        %v836 = vmul.f32 %v817, 0.5
        %v837 = vmul.f32 %v819, 0.5
        %v838 = vmul.f32 %v821, 0.5
        %v839 = vmul.f32 %v785, 0.70710677
        %v840 = vmul.f32 %v787, 0.70710677
        %v841 = vmul.f32 %v789, 0.70710677
        %v842 = vmul.f32 %v791, 0.70710677
        %v843 = vmul.f32 %v795, 0.70710677
        %v844 = vmul.f32 %v797, 0.70710677
        %v845 = vmul.f32 %v799, 0.70710677
        %v846 = vmul.f32 %v801, 0.70710677
        %v847 = vmul.f32 %v805, 0.70710677
        %v848 = vmul.f32 %v807, 0.70710677
        %v849 = vmul.f32 %v809, 0.70710677
        %v850 = vmul.f32 %v811, 0.70710677
        %v851 = vmul.f32 %v815, 0.70710677
        %v852 = vmul.f32 %v817, 0.70710677
        %v853 = vmul.f32 %v819, 0.70710677
        %v854 = vmul.f32 %v821, 0.70710677
        %v855 = verf.f32.pop %v839
        %v856 = verf.f32.pop %v840
        %v857 = verf.f32.pop %v841
        %v858 = verf.f32.pop %v842
        %v859 = verf.f32.pop %v843
        %v860 = verf.f32.pop %v844
        %v861 = verf.f32.pop %v845
        %v862 = verf.f32.pop %v846
        %v863 = verf.f32.pop %v847
        %v864 = verf.f32.pop %v848
        %v865 = verf.f32.pop %v849
        %v866 = verf.f32.pop %v850
        %v867 = verf.f32.pop %v851
        %v868 = verf.f32.pop %v852
        %v869 = verf.f32.pop %v853
        %v870 = verf.f32.pop %v854
        %v871 = vadd.f32 %v855, 1.0
        %v872 = vadd.f32 %v856, 1.0
        %v873 = vadd.f32 %v857, 1.0
        %v874 = vadd.f32 %v858, 1.0
        %v875 = vadd.f32 %v859, 1.0
        %v876 = vadd.f32 %v860, 1.0
        %v877 = vadd.f32 %v861, 1.0
        %v878 = vadd.f32 %v862, 1.0
        %v879 = vadd.f32 %v863, 1.0
        %v880 = vadd.f32 %v864, 1.0
        %v881 = vadd.f32 %v865, 1.0
        %v882 = vadd.f32 %v866, 1.0
        %v883 = vadd.f32 %v867, 1.0
        %v884 = vadd.f32 %v868, 1.0
        %v885 = vadd.f32 %v869, 1.0
        %v886 = vadd.f32 %v870, 1.0
        %v887 = vmul.f32 %v823, %v871
        %v888 = vmul.f32 %v824, %v872
        %v889 = vmul.f32 %v825, %v873
        %v890 = vmul.f32 %v826, %v874
        %v891 = vmul.f32 %v827, %v875
        %v892 = vmul.f32 %v828, %v876
        %v893 = vmul.f32 %v829, %v877
        %v894 = vmul.f32 %v830, %v878
        %v895 = vmul.f32 %v831, %v879
        %v896 = vmul.f32 %v832, %v880
        %v897 = vmul.f32 %v833, %v881
        %v898 = vmul.f32 %v834, %v882
        %v899 = vmul.f32 %v835, %v883
        %v900 = vmul.f32 %v836, %v884
        %v901 = vmul.f32 %v837, %v885
        %v902 = vmul.f32 %v838, %v886
        %v903 = vld [vmem:[#allocation11] sm:$0xf]
        %v904 = vld [vmem:[#allocation11 + $0x4] sm:$0xf]
        %v905 = vld [vmem:[#allocation11 + $0x8] sm:$0xf]
        %v906 = vld [vmem:[#allocation11 + $0xc] sm:$0xf]
        %v907 = vpack.c.bf16 %v889, %v887
        %v908 = vpack.c.bf16 %v890, %v888
        %v909 = vpack.c.bf16 %v893, %v891
        %v910 = vpack.c.bf16 %v894, %v892
        %v911 = vpack.c.bf16 %v897, %v895
        %v912 = vpack.c.bf16 %v898, %v896
        %v913 = vpack.c.bf16 %v901, %v899
        %v914 = vpack.c.bf16 %v902, %v900
        %v915 = vld [vmem:[#allocation13] sm:$0xff]
        %v916 = vld [vmem:[#allocation13 + $0x8] sm:$0xff]
        %v917 = vld [vmem:[#allocation13 + $0x10] sm:$0xff]
        %v918 = vld [vmem:[#allocation13 + $0x18] sm:$0xff]
        %920 = vset.pattern.permute.xlu0 0
        %921 = vperm.xlu0 %920, %v915
        %v922 = vpop.permute.xlu0 %921
        %925 = vset.pattern.permute.xlu0 0
        %926 = vperm.xlu0 %925, %v916
        %v927 = vpop.permute.xlu0 %926
        %930 = vset.pattern.permute.xlu0 0
        %931 = vperm.xlu0 %930, %v917
        %v932 = vpop.permute.xlu0 %931
        %935 = vset.pattern.permute.xlu0 0
        %936 = vperm.xlu0 %935, %v918
        %v937 = vpop.permute.xlu0 %936
        %v943 = vunpack.c.l.b16 %v903
        %v944 = vunpack.c.l.b16 %v904
        %v945 = vunpack.c.l.b16 %v905
        %v946 = vunpack.c.l.b16 %v906
        %v947 = vpack.c.b16 %v944, %v943
        %v948 = vpack.c.b16 %v946, %v945
        %v950 = vsel %vm737, %v947, 0
        %v953 = vsel %vm737, %v948, 0
        %955 = vmatprep.subr.bf16.mxu0 %v908
        %956 = vmatpush1.bf16.msra.mxu0 %v907
        %957 = vmatprep.subr.bf16.mxu0 %v910
        %958 = vmatpush1.bf16.msra.mxu0 %v909
        %959 = vmatprep.subr.bf16.mxu0 %v912
        %960 = vmatpush1.bf16.msra.mxu0 %v911
        %961 = vmatprep.subr.bf16.mxu0 %v914
        %962 = vmatpush1.bf16.msra.mxu0 %v913
        %963 = vmatprep.subr.bf16.mxu0 0
        %964 = vmatpush1.bf16.msra.mxu0 0
        %965 = vmatprep.subr.bf16.mxu0 0
        %966 = vmatpush1.bf16.msra.mxu0 0
        %967 = vmatprep.subr.bf16.mxu0 0
        %968 = vmatpush1.bf16.msra.mxu0 0
        %969 = vmatprep.subr.bf16.mxu0 0
        %970 = vmatpush1.bf16.msra.mxu0 0
        %971 = vmatprep.subr.bf16.mxu0 0
        %972 = vmatpush1.bf16.msra.mxu0 0
        %973 = vmatprep.subr.bf16.mxu0 0
        %974 = vmatpush1.bf16.msra.mxu0 0
        %975 = vmatprep.subr.bf16.mxu0 0
        %976 = vmatpush1.bf16.msra.mxu0 0
        %977 = vmatprep.subr.bf16.mxu0 0
        %978 = vmatpush1.bf16.msra.mxu0 0
        %979 = vmatprep.subr.bf16.mxu0 0
        %980 = vmatpush1.bf16.msra.mxu0 0
        %981 = vmatprep.subr.bf16.mxu0 0
        %982 = vmatpush1.bf16.msra.mxu0 0
        %983 = vmatprep.subr.bf16.mxu0 0
        %984 = vmatpush1.bf16.msra.mxu0 0
        %985 = vmatprep.subr.bf16.mxu0 0
        %986 = vmatpush1.bf16.msra.mxu0 0
        %987 = vmatprep.mubr.bf16.mxu0 0
        %988 = vmatmul.mubr.bf16.gmra.mrb[0].mxu0 %v950
        %v989 = vpop.f32.mrb[0].mxu0
        %v990 = vadd.f32 %v922, %v989
        %v991 = vpop.f32.mrb[0].mxu0
        %v992 = vadd.f32 %v922, %v991
        %v993 = vpop.f32.mrb[0].mxu0
        %v994 = vadd.f32 %v927, %v993
        %v995 = vpop.f32.mrb[0].mxu0
        %v996 = vadd.f32 %v927, %v995
        %997 = vmatprep.mubr.bf16.mxu0 0
        %998 = vmatmul.mubr.bf16.gmra.mrb[0].mxu0 %v953
        %v999 = vpop.f32.mrb[0].mxu0
        %v1000 = vadd.f32 %v932, %v999
        %v1001 = vpop.f32.mrb[0].mxu0
        %v1002 = vadd.f32 %v932, %v1001
        %v1003 = vpop.f32.mrb[0].mxu0
        %v1004 = vadd.f32 %v937, %v1003
        %v1005 = vpop.f32.mrb[0].mxu0
        %v1006 = vadd.f32 %v937, %v1005
        %1007 = vdwg.mxu0
        %1008 = vst [vmem:[%s401] sm:$0xff] %v990
        %1009 = vst [vmem:[%s401 + $0x8] sm:$0xff] %v992
        %1010 = vst [vmem:[%s401 + $0x10] sm:$0xff] %v994
        %1011 = vst [vmem:[%s401 + $0x18] sm:$0xff] %v996
        %1012 = vst [vmem:[%s401 + $0x20] sm:$0xff] %v1000
        %1013 = vst [vmem:[%s401 + $0x28] sm:$0xff] %v1002
        %1014 = vst [vmem:[%s401 + $0x30] sm:$0xff] %v1004
        %1015 = vst [vmem:[%s401 + $0x38] sm:$0xff] %v1006
        %s1016 = sand.u32 %s203, 1
        %s1017 = scalar_lea.sflag [#allocation4], %s1016
        %s1018 = sand.u32 %s203, 1
        %s1019 = smul.addr %s1018, 64
        %s1020 = scalar_lea.vmem [#allocation14], %s1019
        // Predicated region
        $region77: #{proj_head_forward.1} parent=47 // pred_check
          %p1021 = pneg %p213
        $region78: #{proj_head_forward.1} parent=47 // pred_check_branch
          %1023 = sbr.rel (%p1021) target = $region80
        $region79: #{proj_head_forward.1} parent=47 // pred_region
          %s1024 = smul.u32 2, %s32
          %s1026 = ssub.s32 1024, 1024
          %1027 = vsyncadd %s1017, %s1026
          %s1028 = smul.addr %s31, 8
          %s1029 = sadd.s32 %s1024, %s1028
          %s1030 = smul.addr %s1029, 128
          %s1031 = scalar_lea.hbm %s7, %s1030
          %s1032 = sshll.u32 %s1020, 4
          %s1033 = int_to_ptr.vmem [resolvable:$true] %s1032
          %1038 = dma.vmem_to_hbm [thread:$0]  %s1033, 1024, %s1031, %s1017, 256, 256, 16
        $region80: #{proj_head_forward.1} parent=47 // pred_fallthru
          _
      $region48: #{proj_head_forward.1} parent=5 // pred_fallthru
        _
      %p1039 = scmp.le.s32.totalorder 2, %s22
      // Predicated region
      $region81: #{proj_head_forward.1} parent=5 // pred_check
        %p1040 = pneg %p1039
      $region82: #{proj_head_forward.1} parent=5 // pred_check_branch
        %1042 = sbr.rel (%p1040) target = $region84
      $region83: #{proj_head_forward.1} parent=5 // pred_region
        %s1043 = ssub.s32 %s22, 2
        // Predicated region
        $region85: #{proj_head_forward.1} parent=83 // pred_check
          %p1044 = pneg %p219
        $region86: #{proj_head_forward.1} parent=83 // pred_check_branch
          %1046 = sbr.rel (%p1044) target = $region88
        $region87: #{proj_head_forward.1} parent=83 // pred_region
          %s1047 = sand.u32 %s204, 1
          %s1048 = scalar_lea.sflag [#allocation4], %s1047
          %s1049 = sand.u32 %s204, 1
          %s1050 = smul.addr %s1049, 64
          %s1051 = scalar_lea.vmem [#allocation14], %s1050
          %1052 = dma.done %s1048, 1024
        $region88: #{proj_head_forward.1} parent=83 // pred_fallthru
          _
      $region84: #{proj_head_forward.1} parent=5 // pred_fallthru
        _
    $region6: #{proj_head_forward.1} parent=1 // loop_footer
      %s26 = sadd.s32 1, %s22
    $region7: #{proj_head_forward.1} parent=1 // loop_footer_branch
      %21 = sbr.rel target = $region3
    $region8: #{proj_head_forward.1} parent=1 // loop_exit
      _
    %1053 = vsyncpa [#allocation3], 1
    %s1054 = scalar_lea.sflag [#allocation3], 1
    %1055 = vsyncpa %s1054, 1
    %1056 = vsyncpa [#allocation6], 1
    %1057 = vsyncpa [#allocation9], 1
    %1058 = vsyncpa [#allocation12], 1
    %1059 = vsyncpa [#allocation4], 1
    %s1060 = scalar_lea.sflag [#allocation4], 1
    %1061 = vsyncpa %s1060, 1

</llo_original>
